<compile_context>
chip_gen: v7x
topology: tpu7x:2x2x1
jax: 0.10.0
libtpu: 0.0.40
codegen_flags: <defaults>
</compile_context>

<pallas_src>
import functools

import numpy as np
import jax
import jax.numpy as jnp
from jax import lax
from jax.experimental import pallas as pl
from jax.experimental.pallas import tpu as pltpu

_LANES = 128
_SUBLANES = 8


def _backproject_kernel(invk_ref, depth_ref, out_ref, *, width, tile_rows,
                        use_float_divmod):
    # invk_ref : (B, 9)                  SMEM, scalar-prefetched inv_K[:3,:3]
    # depth_ref: (1, tile_rows, 128)     VMEM depth tile
    # out_ref  : (1, 4, tile_rows, 128)  VMEM output tile
    b = pl.program_id(0)
    t = pl.program_id(1)

    # 3x3 inverse intrinsics as scalars (broadcast into VPU FMAs).
    k00 = invk_ref[b, 0]
    k01 = invk_ref[b, 1]
    k02 = invk_ref[b, 2]
    k10 = invk_ref[b, 3]
    k11 = invk_ref[b, 4]
    k12 = invk_ref[b, 5]
    k20 = invk_ref[b, 6]
    k21 = invk_ref[b, 7]
    k22 = invk_ref[b, 8]

    # Homogeneous pixel coordinates generated in-register (no HBM traffic).
    row = lax.broadcasted_iota(jnp.int32, (tile_rows, _LANES), 0)
    lane = lax.broadcasted_iota(jnp.int32, (tile_rows, _LANES), 1)
    lin = (t * tile_rows + row) * _LANES + lane          # flat pixel index

    if use_float_divmod:
        # Exact for lin < 2^22 (guarded in the wrapper): ~3 VPU ops instead of
        # the ~10-op constant int32 div/mod expansion.
        lin_f = lin.astype(jnp.float32)
        y = jnp.floor((lin_f + jnp.float32(0.5)) * jnp.float32(1.0 / width))
        x = lin_f - y * jnp.float32(width)
    else:
        x = (lin % width).astype(jnp.float32)
        y = (lin // width).astype(jnp.float32)

    d = depth_ref[0]                                     # (tile_rows, 128)

    # cam = (inv_K[:3,:3] @ [x; y; 1]) * depth   -> pure VPU, no MXU.
    # Direct per-plane stores: no stacked VMEM temporary, single write each.
    out_ref[0, 0] = (k00 * x + k01 * y + k02) * d
    out_ref[0, 1] = (k10 * x + k11 * y + k12) * d
    out_ref[0, 2] = (k20 * x + k21 * y + k22) * d
    out_ref[0, 3] = jnp.ones_like(d)


def backproject_depth(depth, inv_K, height, width, *, tile_rows=2048):
    """depth: (B, 1, H, W) f32; inv_K: (B, 4, 4) f32 -> (B, 4, H*W) f32.

    tile_rows (pixels/128 per grid step) default 2048 keeps ~10 MiB of
    double-buffered blocks: fits the 16 MiB scoped-VMEM default on v5e and is
    in the 2048-4096 sweet spot for v6e/v7x.
    """
    B = depth.shape[0]
    HW = height * width

    # Lane-dense (rows, 128) pixel layout; pad only so rows are a multiple of
    # 8 sublanes (no pad at all when H*W % 1024 == 0, the common case).
    R = pl.cdiv(HW, _LANES)
    R8 = ((R + _SUBLANES - 1) // _SUBLANES) * _SUBLANES
    HW_pad = R8 * _LANES

    tile_rows = max(_SUBLANES, (min(tile_rows, R8) // _SUBLANES) * _SUBLANES)
    n_tiles = pl.cdiv(R8, tile_rows)          # ragged last block is masked
    grid = (B, n_tiles)

    depth_flat = depth.reshape(B, HW).astype(jnp.float32)
    if HW_pad != HW:
        depth_flat = jnp.pad(depth_flat, ((0, 0), (0, HW_pad - HW)))
    depth_2d = depth_flat.reshape(B, R8, _LANES)

    invk_flat = inv_K[:, :3, :3].reshape(B, 9).astype(jnp.float32)

    # Float divmod is exact only while the largest in-kernel linear index
    # (including the ragged last block) stays below 2^22.
    max_lin = n_tiles * tile_rows * _LANES
    use_float_divmod = max_lin < (1 << 22)

    kernel = functools.partial(
        _backproject_kernel,
        width=width,
        tile_rows=tile_rows,
        use_float_divmod=use_float_divmod,
    )

    cost = pl.CostEstimate(
        flops=9 * B * HW,
        transcendentals=0,
        bytes_accessed=5 * B * HW * 4,        # 1 plane read + 4 planes written
    )

    out = pl.pallas_call(
        kernel,
        out_shape=jax.ShapeDtypeStruct((B, 4, R8, _LANES), jnp.float32),
        grid_spec=pltpu.PrefetchScalarGridSpec(
            num_scalar_prefetch=1,            # invk_flat -> SMEM
            grid=grid,
            in_specs=[
                pl.BlockSpec(
                    (1, tile_rows, _LANES), lambda b, t, invk: (b, t, 0)
                ),
            ],
            out_specs=pl.BlockSpec(
                (1, 4, tile_rows, _LANES), lambda b, t, invk: (b, 0, t, 0)
            ),
        ),
        compiler_params=pltpu.CompilerParams(
            dimension_semantics=("parallel", "parallel")
        ),
        cost_estimate=cost,
    )(invk_flat, depth_2d)

    out = out.reshape(B, 4, HW_pad)
    if HW_pad != HW:
        out = out[:, :, :HW]
    return out


def _reference(depth, inv_K, height, width):
    B = depth.shape[0]
    HW = height * width
    xs, ys = np.meshgrid(range(width), range(height), indexing="xy")
    pix = np.stack([xs.reshape(-1), ys.reshape(-1), np.ones(HW)], 0).astype(np.float32)
    pix = jnp.broadcast_to(jnp.asarray(pix), (B, 3, HW))
    cam = jnp.einsum("bij,bjk->bik", inv_K[:, :3, :3], pix)
    cam = depth.reshape(B, 1, HW) * cam
    ones = jnp.ones((B, 1, HW), jnp.float32)
    return jnp.concatenate([cam, ones], axis=1)


if __name__ == "__main__":
    B, H, W = 2, 16, 16
    key = jax.random.PRNGKey(0)
    k1, k2 = jax.random.split(key)

    depth = jax.random.uniform(k1, (B, 1, H, W), jnp.float32, 0.1, 10.0)
    # synthetic inverse intrinsics (deterministic)
    inv_K = jnp.tile(jnp.eye(4, dtype=jnp.float32)[None], (B, 1, 1))
    inv_K = inv_K + 0.01 * jax.random.normal(k2, (B, 4, 4), jnp.float32)

    out = backproject_depth(depth, inv_K, H, W)
    out = jax.block_until_ready(out)

    ref = _reference(depth, inv_K, H, W)
    assert out.shape == (B, 4, H * W)
    assert jnp.allclose(out, ref, atol=1e-5, rtol=1e-5)
    print("KERNEL_OK")
</pallas_src>

<mosaic_0001>
module attributes {stable_mosaic.version = 11 : i64} {
  func.func @_backproject_kernel(%arg0: i32, %arg1: i32, %arg2: memref<2x9xf32, #tpu.memory_space<smem>>, %arg3: memref<1x8x128xf32, #tpu.memory_space<vmem>>, %arg4: memref<1x4x8x128xf32, #tpu.memory_space<vmem>>) attributes {dimension_semantics = [#tpu.dimension_semantics<parallel>, #tpu.dimension_semantics<parallel>], iteration_bounds = array<i64: 2, 1>, scalar_prefetch = 1 : i64, scratch_operands = 0 : i64, tpu.core_type = #tpu.core_type<tc>, window_params = [{transform_indices = @transform_0, window_bounds = array<i64: 1, 8, 128>}, {transform_indices = @transform_1, window_bounds = array<i64: 1, 4, 8, 128>}]} {
    %0 = arith.index_cast %arg0 : i32 to index
    %c0 = arith.constant 0 : index
    %1 = memref.load %arg2[%0, %c0] : memref<2x9xf32, #tpu.memory_space<smem>>
    %2 = arith.index_cast %arg0 : i32 to index
    %c1 = arith.constant 1 : index
    %3 = memref.load %arg2[%2, %c1] : memref<2x9xf32, #tpu.memory_space<smem>>
    %4 = arith.index_cast %arg0 : i32 to index
    %c2 = arith.constant 2 : index
    %5 = memref.load %arg2[%4, %c2] : memref<2x9xf32, #tpu.memory_space<smem>>
    %6 = arith.index_cast %arg0 : i32 to index
    %c3 = arith.constant 3 : index
    %7 = memref.load %arg2[%6, %c3] : memref<2x9xf32, #tpu.memory_space<smem>>
    %8 = arith.index_cast %arg0 : i32 to index
    %c4 = arith.constant 4 : index
    %9 = memref.load %arg2[%8, %c4] : memref<2x9xf32, #tpu.memory_space<smem>>
    %10 = arith.index_cast %arg0 : i32 to index
    %c5 = arith.constant 5 : index
    %11 = memref.load %arg2[%10, %c5] : memref<2x9xf32, #tpu.memory_space<smem>>
    %12 = arith.index_cast %arg0 : i32 to index
    %c6 = arith.constant 6 : index
    %13 = memref.load %arg2[%12, %c6] : memref<2x9xf32, #tpu.memory_space<smem>>
    %14 = arith.index_cast %arg0 : i32 to index
    %c7 = arith.constant 7 : index
    %15 = memref.load %arg2[%14, %c7] : memref<2x9xf32, #tpu.memory_space<smem>>
    %16 = arith.index_cast %arg0 : i32 to index
    %c8 = arith.constant 8 : index
    %17 = memref.load %arg2[%16, %c8] : memref<2x9xf32, #tpu.memory_space<smem>>
    %18 = tpu.iota {dimensions = array<i32: 0>} : vector<8x128xi32>
    %19 = tpu.iota {dimensions = array<i32: 1>} : vector<8x128xi32>
    %c8_i32 = arith.constant 8 : i32
    %20 = arith.muli %arg1, %c8_i32 : i32
    %21 = vector.broadcast %20 : i32 to vector<8x128xi32>
    %22 = arith.addi %21, %18 : vector<8x128xi32>
    %c128_i32 = arith.constant 128 : i32
    %23 = vector.broadcast %c128_i32 : i32 to vector<8x128xi32>
    %24 = arith.muli %22, %23 : vector<8x128xi32>
    %25 = arith.addi %24, %19 : vector<8x128xi32>
    %26 = arith.sitofp %25 : vector<8x128xi32> to vector<8x128xf32>
    %cst = arith.constant 5.000000e-01 : f32
    %27 = vector.broadcast %cst : f32 to vector<8x128xf32>
    %28 = arith.addf %26, %27 : vector<8x128xf32>
    %cst_0 = arith.constant 6.250000e-02 : f32
    %29 = vector.broadcast %cst_0 : f32 to vector<8x128xf32>
    %30 = arith.mulf %28, %29 : vector<8x128xf32>
    %31 = math.floor %30 : vector<8x128xf32>
    %cst_1 = arith.constant 1.600000e+01 : f32
    %32 = vector.broadcast %cst_1 : f32 to vector<8x128xf32>
    %33 = arith.mulf %31, %32 : vector<8x128xf32>
    %34 = arith.subf %26, %33 : vector<8x128xf32>
    %c0_2 = arith.constant 0 : index
    %c0_3 = arith.constant 0 : index
    %c0_4 = arith.constant 0 : index
    %35 = vector.load %arg3[%c0_2, %c0_3, %c0_4] : memref<1x8x128xf32, #tpu.memory_space<vmem>>, vector<1x8x128xf32>
    %36 = vector.shape_cast %35 : vector<1x8x128xf32> to vector<8x128xf32>
    %37 = vector.broadcast %1 : f32 to vector<8x128xf32>
    %38 = arith.mulf %37, %34 : vector<8x128xf32>
    %39 = vector.broadcast %3 : f32 to vector<8x128xf32>
    %40 = arith.mulf %39, %31 : vector<8x128xf32>
    %41 = arith.addf %38, %40 : vector<8x128xf32>
    %42 = vector.broadcast %5 : f32 to vector<8x128xf32>
    %43 = arith.addf %41, %42 : vector<8x128xf32>
    %44 = arith.mulf %43, %36 : vector<8x128xf32>
    %c0_5 = arith.constant 0 : index
    %c0_6 = arith.constant 0 : index
    %c0_7 = arith.constant 0 : index
    %c0_8 = arith.constant 0 : index
    %45 = vector.load %arg4[%c0_5, %c0_6, %c0_7, %c0_8] : memref<1x4x8x128xf32, #tpu.memory_space<vmem>>, vector<1x1x8x128xf32>
    %46 = vector.shape_cast %45 : vector<1x1x8x128xf32> to vector<8x128xf32>
    %47 = vector.shape_cast %44 : vector<8x128xf32> to vector<1x1x8x128xf32>
    tpu.vector_store %arg4[%c0_5, %c0_6, %c0_7, %c0_8], %47 {strides = array<i32>} : memref<1x4x8x128xf32, #tpu.memory_space<vmem>>, vector<1x1x8x128xf32>,
    %48 = vector.broadcast %7 : f32 to vector<8x128xf32>
    %49 = arith.mulf %48, %34 : vector<8x128xf32>
    %50 = vector.broadcast %9 : f32 to vector<8x128xf32>
    %51 = arith.mulf %50, %31 : vector<8x128xf32>
    %52 = arith.addf %49, %51 : vector<8x128xf32>
    %53 = vector.broadcast %11 : f32 to vector<8x128xf32>
    %54 = arith.addf %52, %53 : vector<8x128xf32>
    %55 = arith.mulf %54, %36 : vector<8x128xf32>
    %c0_9 = arith.constant 0 : index
    %c1_10 = arith.constant 1 : index
    %c0_11 = arith.constant 0 : index
    %c0_12 = arith.constant 0 : index
    %56 = vector.load %arg4[%c0_9, %c1_10, %c0_11, %c0_12] : memref<1x4x8x128xf32, #tpu.memory_space<vmem>>, vector<1x1x8x128xf32>
    %57 = vector.shape_cast %56 : vector<1x1x8x128xf32> to vector<8x128xf32>
    %58 = vector.shape_cast %55 : vector<8x128xf32> to vector<1x1x8x128xf32>
    tpu.vector_store %arg4[%c0_9, %c1_10, %c0_11, %c0_12], %58 {strides = array<i32>} : memref<1x4x8x128xf32, #tpu.memory_space<vmem>>, vector<1x1x8x128xf32>,
    %59 = vector.broadcast %13 : f32 to vector<8x128xf32>
    %60 = arith.mulf %59, %34 : vector<8x128xf32>
    %61 = vector.broadcast %15 : f32 to vector<8x128xf32>
    %62 = arith.mulf %61, %31 : vector<8x128xf32>
    %63 = arith.addf %60, %62 : vector<8x128xf32>
    %64 = vector.broadcast %17 : f32 to vector<8x128xf32>
    %65 = arith.addf %63, %64 : vector<8x128xf32>
    %66 = arith.mulf %65, %36 : vector<8x128xf32>
    %c0_13 = arith.constant 0 : index
    %c2_14 = arith.constant 2 : index
    %c0_15 = arith.constant 0 : index
    %c0_16 = arith.constant 0 : index
    %67 = vector.load %arg4[%c0_13, %c2_14, %c0_15, %c0_16] : memref<1x4x8x128xf32, #tpu.memory_space<vmem>>, vector<1x1x8x128xf32>
    %68 = vector.shape_cast %67 : vector<1x1x8x128xf32> to vector<8x128xf32>
    %69 = vector.shape_cast %66 : vector<8x128xf32> to vector<1x1x8x128xf32>
    tpu.vector_store %arg4[%c0_13, %c2_14, %c0_15, %c0_16], %69 {strides = array<i32>} : memref<1x4x8x128xf32, #tpu.memory_space<vmem>>, vector<1x1x8x128xf32>,
    %cst_17 = arith.constant 1.000000e+00 : f32
    %70 = vector.broadcast %cst_17 : f32 to vector<8x128xf32>
    %c0_18 = arith.constant 0 : index
    %c3_19 = arith.constant 3 : index
    %c0_20 = arith.constant 0 : index
    %c0_21 = arith.constant 0 : index
    %71 = vector.load %arg4[%c0_18, %c3_19, %c0_20, %c0_21] : memref<1x4x8x128xf32, #tpu.memory_space<vmem>>, vector<1x1x8x128xf32>
    %72 = vector.shape_cast %71 : vector<1x1x8x128xf32> to vector<8x128xf32>
    %73 = vector.shape_cast %70 : vector<8x128xf32> to vector<1x1x8x128xf32>
    tpu.vector_store %arg4[%c0_18, %c3_19, %c0_20, %c0_21], %73 {strides = array<i32>} : memref<1x4x8x128xf32, #tpu.memory_space<vmem>>, vector<1x1x8x128xf32>,
    return
  }
  func.func @transform_0(%arg0: i32, %arg1: i32, %arg2: memref<2x9xf32, #tpu.memory_space<smem>>) -> (i32, i32, i32) {
    %c0_i32 = arith.constant 0 : i32
    %c0_i32_0 = arith.constant 0 : i32
    return %arg0, %arg1, %c0_i32 : i32, i32, i32
  }
  func.func @transform_1(%arg0: i32, %arg1: i32, %arg2: memref<2x9xf32, #tpu.memory_space<smem>>) -> (i32, i32, i32, i32) {
    %c0_i32 = arith.constant 0 : i32
    %c0_i32_0 = arith.constant 0 : i32
    %c0_i32_1 = arith.constant 0 : i32
    return %arg0, %c0_i32, %arg1, %c0_i32_0 : i32, i32, i32, i32
  }
}

</mosaic_0001>

<llo_original>
// kernel: tpu_custom_call.1
$region0: #{tpu_custom_call.1}
  #allocation0 [shape = 'u32[]', space=smem, size = 0x4, offset = 0x4, fixed_abs, tag = 'smem constant byte address 0x4 - core index']
  #allocation1 [shape = 'u32[144,128]{1,0:T(1,128)}', space=vmem, size = 0x12000, scoped, tag = 'internal scratch']
  #allocation2 [shape = 's32[1]{0}', space=sflag, size = 0x4, scoped, tag = 'scoped memory for tpu_custom_call.1']
  #allocation3 [shape = 'u8[1024]{0}', space=smem, size = 0x400, scoped, tag = 'prefetched SMEM operand 0']
  %s0 = inlined_call_operand.hbm [shape: f32[2,9], index: 0, kind: input, shape index: {}]
  %s1 = inlined_call_operand.hbm [shape: f32[2,8,128], index: 1, kind: input, shape index: {}]
  %s2 = inlined_call_operand.hbm [shape: f32[2,4,8,128], index: 2, kind: output, shape index: {}]
  %s3 = sld [smem:[#allocation0]]
  $region41: #{tpu_custom_call.1} parent=0
    _
  %s5 = ssub.s32 1, %s3
  %s6 = scalar_select 0, %s5, %s3
  %8 = dma.hbm_to_smem %s0, 32, [#allocation3], [#allocation2]
  %9 = dma.done [#allocation2], 32
  %10 = sfence
  $region1: #{tpu_custom_call.1} parent=0
    #allocation4 [shape = 'u8[8192]{0}', space=vmem, size = 0x2000, scoped, tag = 'input window, operand 1']
    #allocation5 [shape = 's32[2]{0}', space=sflag, size = 0x8, scoped, tag = 'scoped memory for tpu_custom_call.1']
    #allocation6 [shape = 's32[2]{0}', space=sflag, size = 0x8, scoped, tag = 'scoped memory for tpu_custom_call.1']
    #allocation7 [shape = 'u8[32768]{0}', space=vmem, size = 0x8000, scoped, tag = 'output window, operand 0']
    %11 = vsyncpa [#allocation5], 0
    %s12 = scalar_lea.sflag [#allocation5], 1
    %13 = vsyncpa %s12, 0
    %14 = vsyncpa [#allocation6], 0
    %s15 = scalar_lea.sflag [#allocation6], 1
    %16 = vsyncpa %s15, 0
    loop: start=0, step=1, limit=4
    $region2: #{tpu_custom_call.1} parent=1 // loop_pre_header
      _
    $region3: #{tpu_custom_call.1} parent=1 // loop_header
      %s18 = sphi 0, %s22
      %p19 = scmp.ge.s32.totalorder %s18, 4
      %s25 = sphi 0, %s37
      %s26 = sphi 0, %s33
      %s27 = sphi 0, %s25
      %s28 = sphi 0, %s26
      %s29 = sphi 0, %s27
      %s30 = sphi 0, %s28
      %s42 = sphi 0, %s44
      %s45 = sphi 0, %s42
      %s46 = sphi 0, %s45
      %s62 = sphi 0, %s46
      %s70 = sphi 0, %s72
      %s73 = sphi 0, %s70
      %s74 = sphi 0, %s73
      %s90 = sphi 0, %s74
    $region4: #{tpu_custom_call.1} parent=1 // loop_header_branch
      %21 = sbr.rel (%p19) target = $region8
    $region5: #{tpu_custom_call.1} parent=1 // loop_body
      %s23 = ssub.s32 %s18, 1
      %s24 = ssub.s32 %s18, 2
      %s31 = sadd.s32 1, %s26
      %p32 = scmp.ge.s32.totalorder %s31, 1
      %s33 = scalar_select %p32, 0, %s31
      %s34 = sadd.s32 1, %s25
      %s35 = scalar_select %p32, %s34, %s25
      %p36 = scmp.ge.s32.totalorder %s35, 2
      %s37 = scalar_select %p36, 0, %s35
      %s38 = ssub.s32 %s25, %s37
      %s39 = ssub.s32 %s26, %s33
      %s40 = sor.u32 %s38, %s39
      %p41 = scmp.eq.s32.totalorder %s40, 0
      %s43 = sadd.s32 %s42, 1
      %s44 = scalar_select %p41, %s42, %s43
      %p47 = pneg %p41
      %p48 = scmp.eq.s32.totalorder %s18, 1
      %p49 = por %p47, %p48
      %p50 = scmp.ne.s32.totalorder %s42, %s45
      %p51 = scmp.eq.s32.totalorder %s18, 0
      %p52 = por %p50, %p51
      %p53 = scmp.ne.s32.totalorder %s42, %s45
      %p54 = scmp.eq.s32.totalorder %s23, 1
      %p55 = por %p53, %p54
      %p56 = scmp.ne.s32.totalorder %s45, %s46
      %p57 = scmp.eq.s32.totalorder %s23, 0
      %p58 = por %p56, %p57
      %p59 = scmp.ne.s32.totalorder %s45, %s46
      %p60 = scmp.eq.s32.totalorder %s24, 1
      %p61 = por %p59, %p60
      %p63 = scmp.ne.s32.totalorder %s46, %s62
      %p64 = scmp.eq.s32.totalorder %s24, 0
      %p65 = por %p63, %p64
      %s66 = ssub.s32 %s25, %s37
      %s67 = ssub.s32 %s26, %s33
      %s68 = sor.u32 %s66, %s67
      %p69 = scmp.eq.s32.totalorder %s68, 0
      %s71 = sadd.s32 %s70, 1
      %s72 = scalar_select %p69, %s70, %s71
      %p75 = pneg %p69
      %p76 = scmp.eq.s32.totalorder %s18, 1
      %p77 = por %p75, %p76
      %p78 = scmp.ne.s32.totalorder %s70, %s73
      %p79 = scmp.eq.s32.totalorder %s18, 0
      %p80 = por %p78, %p79
      %p81 = scmp.ne.s32.totalorder %s70, %s73
      %p82 = scmp.eq.s32.totalorder %s23, 1
      %p83 = por %p81, %p82
      %p84 = scmp.ne.s32.totalorder %s73, %s74
      %p85 = scmp.eq.s32.totalorder %s23, 0
      %p86 = por %p84, %p85
      %p87 = scmp.ne.s32.totalorder %s73, %s74
      %p88 = scmp.eq.s32.totalorder %s24, 1
      %p89 = por %p87, %p88
      %p91 = scmp.ne.s32.totalorder %s74, %s90
      %p92 = scmp.eq.s32.totalorder %s24, 0
      %p93 = por %p91, %p92
      %p94 = scmp.le.s32.totalorder 1, %s18
      %p95 = scmp.lt.s32.totalorder %s18, 3
      %p96 = pnand %p94, %p95
      %p97 = pneg %p96
      // Predicated region
      $region9: #{tpu_custom_call.1} parent=5 // pred_check
        _
      $region10: #{tpu_custom_call.1} parent=5 // pred_check_branch
        %99 = sbr.rel (%p96) target = $region12
      $region11: #{tpu_custom_call.1} parent=5 // pred_region
        %s100 = ssub.s32 %s18, 1
      $region12: #{tpu_custom_call.1} parent=5 // pred_fallthru
        _
      %p101 = scmp.lt.s32.totalorder %s18, 2
      // Predicated region
      $region13: #{tpu_custom_call.1} parent=5 // pred_check
        %p102 = pneg %p101
      $region14: #{tpu_custom_call.1} parent=5 // pred_check_branch
        %104 = sbr.rel (%p102) target = $region16
      $region15: #{tpu_custom_call.1} parent=5 // pred_region
        // Predicated region
        $region17: #{tpu_custom_call.1} parent=15 // pred_check
          %p105 = pneg %p52
        $region18: #{tpu_custom_call.1} parent=15 // pred_check_branch
          %107 = sbr.rel (%p105) target = $region20
        $region19: #{tpu_custom_call.1} parent=15 // pred_region
          %s108 = sand.u32 %s42, 1
          %s109 = scalar_lea.sflag [#allocation5], %s108
          %s110 = sand.u32 %s42, 1
          %s111 = smul.addr %s110, 8
          %s112 = scalar_lea.vmem [#allocation4], %s111
          %s114 = ssub.s32 128, 128
          %115 = vsyncadd %s109, %s114
          %s116 = sadd.s32 %s26, %s25
          %s117 = smul.addr %s116, 128
          %s118 = scalar_lea.hbm %s1, %s117
          %s120 = sshll.u32 %s112, 4
          %s121 = int_to_ptr.vmem [resolvable:$true] %s120
          %123 = dma.hbm_to_vmem [thread:$0]  %s118, 128, %s121, %s109
        $region20: #{tpu_custom_call.1} parent=15 // pred_fallthru
          _
      $region16: #{tpu_custom_call.1} parent=5 // pred_fallthru
        _
      %p124 = scmp.le.s32.totalorder 1, %s18
      %p125 = scmp.lt.s32.totalorder %s18, 3
      %p126 = pnand %p124, %p125
      %p127 = pneg %p126
      // Predicated region
      $region21: #{tpu_custom_call.1} parent=5 // pred_check
        _
      $region22: #{tpu_custom_call.1} parent=5 // pred_check_branch
        %129 = sbr.rel (%p126) target = $region24
      $region23: #{tpu_custom_call.1} parent=5 // pred_region
        %s130 = ssub.s32 %s18, 1
        %s131 = sand.u32 %s45, 1
        %s132 = scalar_lea.sflag [#allocation5], %s131
        %s133 = sand.u32 %s45, 1
        %s134 = smul.addr %s133, 8
        %s135 = scalar_lea.vmem [#allocation4], %s134
        // Predicated region
        $region25: #{tpu_custom_call.1} parent=23 // pred_check
          %p136 = pneg %p58
        $region26: #{tpu_custom_call.1} parent=23 // pred_check_branch
          %138 = sbr.rel (%p136) target = $region28
        $region27: #{tpu_custom_call.1} parent=23 // pred_region
          %139 = dma.done %s132, 128
        $region28: #{tpu_custom_call.1} parent=23 // pred_fallthru
          _
        %s140 = sand.u32 %s45, 1
        %s141 = scalar_lea.sflag [#allocation5], %s140
        %s142 = sand.u32 %s45, 1
        %s143 = smul.addr %s142, 8
        %s144 = scalar_lea.vmem [#allocation4], %s143
        %p145 = pneg %p58
        %p146 = pneg %p55
        %p147 = pneg %p86
        %p148 = pneg %p83
        %s149 = sand.u32 %s73, 1
        %s150 = scalar_lea.sflag [#allocation6], %s149
        %s151 = sand.u32 %s73, 1
        %s152 = smul.addr %s151, 32
        %s153 = scalar_lea.vmem [#allocation7], %s152
        %s154 = smul.u32 %s27, 128
        %s155 = sld [smem:[#allocation3 + %s154]]
        %s156 = sadd.s32 %s154, 1
        %s157 = sld [smem:[#allocation3 + %s156]]
        %s158 = sadd.s32 %s154, 2
        %s159 = sld [smem:[#allocation3 + %s158]]
        %s160 = sadd.s32 %s154, 3
        %s161 = sld [smem:[#allocation3 + %s160]]
        %s162 = sadd.s32 %s154, 4
        %s163 = sld [smem:[#allocation3 + %s162]]
        %s164 = sadd.s32 %s154, 5
        %s165 = sld [smem:[#allocation3 + %s164]]
        %s166 = sadd.s32 %s154, 6
        %s167 = sld [smem:[#allocation3 + %s166]]
        %s168 = sadd.s32 %s154, 7
        %s169 = sld [smem:[#allocation3 + %s168]]
        %s170 = sadd.s32 %s154, 8
        %s171 = sld [smem:[#allocation3 + %s170]]
        %v172 = vlaneseq
        %v173 = vshrl.u32 %v172, 7
        %v174 = vlaneseq
        %v175 = vand.u32 %v174, 127
        %s176 = smul.u32 %s28, 8
        %v177 = vstv %s176
        %v178 = vadd.s32 %v177, %v173
        %v179 = vmul.u32 %v178, 128
        %v180 = vadd.s32 %v179, %v175
        %v181 = vcvt.s32.f32 %v180
        %v182 = vadd.f32 %v181, 0.5
        %v183 = vmul.f32 %v182, 0.0625
        %v184 = vfloor.f32 %v183
        %v185 = vmul.f32 %v184, 16.0
        %v186 = vsub.f32 %v181, %v185
        %v187 = vld [vmem:[%s135] sm:$0xff]
        %v188 = vstv %s155
        %v189 = vmul.f32 %v188, %v186
        %v190 = vstv %s157
        %v191 = vmul.f32 %v190, %v184
        %v192 = vadd.f32 %v189, %v191
        %v193 = vstv %s159
        %v194 = vadd.f32 %v192, %v193
        %v195 = vmul.f32 %v194, %v187
        %196 = vst [vmem:[%s153] sm:$0xff] %v195
        %v197 = vstv %s161
        %v198 = vmul.f32 %v197, %v186
        %v199 = vstv %s163
        %v200 = vmul.f32 %v199, %v184
        %v201 = vadd.f32 %v198, %v200
        %v202 = vstv %s165
        %v203 = vadd.f32 %v201, %v202
        %v204 = vmul.f32 %v203, %v187
        %s205 = scalar_lea.vmem %s153, 8 [#allocation7]
        %206 = vst [vmem:[%s205] sm:$0xff] %v204
        %v207 = vstv %s167
        %v208 = vmul.f32 %v207, %v186
        %v209 = vstv %s169
        %v210 = vmul.f32 %v209, %v184
        %v211 = vadd.f32 %v208, %v210
        %v212 = vstv %s171
        %v213 = vadd.f32 %v211, %v212
        %v214 = vmul.f32 %v213, %v187
        %s215 = scalar_lea.vmem %s153, 16 [#allocation7]
        %216 = vst [vmem:[%s215] sm:$0xff] %v214
        %s217 = scalar_lea.vmem %s153, 24 [#allocation7]
        %218 = vst [vmem:[%s217] sm:$0xff] 1.0
        %s219 = sand.u32 %s73, 1
        %s220 = scalar_lea.sflag [#allocation6], %s219
        %s221 = sand.u32 %s73, 1
        %s222 = smul.addr %s221, 32
        %s223 = scalar_lea.vmem [#allocation7], %s222
        // Predicated region
        $region29: #{tpu_custom_call.1} parent=23 // pred_check
          %p224 = pneg %p83
        $region30: #{tpu_custom_call.1} parent=23 // pred_check_branch
          %226 = sbr.rel (%p224) target = $region32
        $region31: #{tpu_custom_call.1} parent=23 // pred_region
          %s228 = ssub.s32 512, 512
          %229 = vsyncadd %s220, %s228
          %s230 = smul.addr %s27, 4
          %s231 = sadd.s32 %s28, %s230
          %s232 = smul.addr %s231, 128
          %s233 = scalar_lea.hbm %s2, %s232
          %s234 = sshll.u32 %s223, 4
          %s235 = int_to_ptr.vmem [resolvable:$true] %s234
          %240 = dma.vmem_to_hbm [thread:$0]  %s235, 512, %s233, %s220, 128, 128, 8
        $region32: #{tpu_custom_call.1} parent=23 // pred_fallthru
          _
      $region24: #{tpu_custom_call.1} parent=5 // pred_fallthru
        _
      %p241 = scmp.le.s32.totalorder 2, %s18
      // Predicated region
      $region33: #{tpu_custom_call.1} parent=5 // pred_check
        %p242 = pneg %p241
      $region34: #{tpu_custom_call.1} parent=5 // pred_check_branch
        %244 = sbr.rel (%p242) target = $region36
      $region35: #{tpu_custom_call.1} parent=5 // pred_region
        %s245 = ssub.s32 %s18, 2
        // Predicated region
        $region37: #{tpu_custom_call.1} parent=35 // pred_check
          %p246 = pneg %p89
        $region38: #{tpu_custom_call.1} parent=35 // pred_check_branch
          %248 = sbr.rel (%p246) target = $region40
        $region39: #{tpu_custom_call.1} parent=35 // pred_region
          %s249 = sand.u32 %s74, 1
          %s250 = scalar_lea.sflag [#allocation6], %s249
          %s251 = sand.u32 %s74, 1
          %s252 = smul.addr %s251, 32
          %s253 = scalar_lea.vmem [#allocation7], %s252
          %254 = dma.done %s250, 512
        $region40: #{tpu_custom_call.1} parent=35 // pred_fallthru
          _
      $region36: #{tpu_custom_call.1} parent=5 // pred_fallthru
        _
    $region6: #{tpu_custom_call.1} parent=1 // loop_footer
      %s22 = sadd.s32 1, %s18
    $region7: #{tpu_custom_call.1} parent=1 // loop_footer_branch
      %17 = sbr.rel target = $region3
    $region8: #{tpu_custom_call.1} parent=1 // loop_exit
      _
    %255 = vsyncpa [#allocation5], 1
    %s256 = scalar_lea.sflag [#allocation5], 1
    %257 = vsyncpa %s256, 1
    %258 = vsyncpa [#allocation6], 1
    %s259 = scalar_lea.sflag [#allocation6], 1
    %260 = vsyncpa %s259, 1

</llo_original>
